<compile_context>
chip_gen: v6e
topology: v6e:2x2x1
jax: 0.10.0
libtpu: 0.0.40
codegen_flags: <defaults>
</compile_context>

<pallas_src>
import functools

import jax
import jax.numpy as jnp
from jax import lax
from jax.experimental import pallas as pl
from jax.experimental.pallas import tpu as pltpu


def _round_up(a, b):
    return (a + b - 1) // b * b


def s2v_dqn_layer_kernel(x_ref, row_ref, rhs_ref, wfused_ref, out_ref, acc_ref):
    """Grid = (node_tiles, edge_tiles); edge axis (last, "arbitrary") is the reduction.

    x_ref:      (tN, Dp)   f32   node features (zero-padded)
    row_ref:    (1, tE)    int32 destination node per edge (-1 for padded edges)
    rhs_ref:    (tE, 2Hp)  bf16  [node_embedding[col] | relu(edge_attr * w4)] (padded)
    wfused_ref: (Dp+2Hp, Hp) f32 vstack([w1, w2, w3]) zero-padded
    out_ref:    (tN, Hp)   f32
    acc_ref:    (tN, Dp+2Hp) f32 [x | node_aggr | edge_aggr] accumulator

    NOTE: the finalize-only write to out_ref relies on the edge axis being the
    innermost grid axis; do not reorder the grid.
    """
    e_idx = pl.program_id(1)
    tN, Dp = x_ref.shape
    tE = row_ref.shape[1]
    acc_w = acc_ref.shape[1]

    # --- init accumulator on the first edge tile of this node tile ---
    @pl.when(e_idx == 0)
    def _():
        acc_ref[:, :Dp] = x_ref[...]
        acc_ref[:, Dp:] = jnp.zeros((tN, acc_w - Dp), jnp.float32)

    # Scatter one-hot for this node tile: S[n, e] = 1 iff row[e] == n_off + n.
    # 0/1-valued -> exact in bf16; padded edges (row = -1) never match -> zero.
    n_off = pl.program_id(0) * tN
    iota_s = lax.broadcasted_iota(jnp.int32, (tN, tE), 0) + n_off
    S = (iota_s == row_ref[...]).astype(jnp.bfloat16)              # (tN, tE)

    # Fused scatter-sum of both aggregations: one bf16 MXU pass (tN,tE)x(tE,2Hp),
    # f32 accumulation.
    acc_ref[:, Dp:] += jnp.dot(S, rhs_ref[...],
                               preferred_element_type=jnp.float32)

    # --- finalize: fused output projection relu([x | aggr] @ [w1; w2; w3]) in f32 ---
    @pl.when(e_idx == pl.num_programs(1) - 1)
    def _():
        out = jnp.dot(acc_ref[...], wfused_ref[...],
                      preferred_element_type=jnp.float32)           # (tN, Hp)
        out_ref[...] = jnp.maximum(out, 0.0).astype(out_ref.dtype)


@functools.partial(jax.jit, static_argnames=("tile_e", "tile_n"))
def s2v_dqn_layer(x, edge_index, edge_attr, node_embedding, w1, w2, w3, w4,
                  *, tile_e=2048, tile_n=256):
    """x: (N, D) f32; edge_index: (2, E) int; edge_attr: (E, 1) f32;
    node_embedding: (N, H) f32; w*: (in, out) f32. Returns (N, H) f32."""
    N, D = x.shape
    E = edge_index.shape[1]
    H = w1.shape[1]

    # Lane-dense padding (multiples of 128 on feature axes, 8 on node axis).
    Hp = _round_up(H, 128)
    Dp = _round_up(D, 128)

    tile_n = _round_up(tile_n, 8)
    tile_e = _round_up(tile_e, 128)
    tN = min(tile_n, _round_up(N, 8))
    # Keep >= 2 node tiles when possible so the "parallel" axis feeds both v7x TCs.
    if _round_up(N, tN) // tN < 2 and tN >= 16:
        tN = _round_up(tN // 2, 8)
    Np = _round_up(N, tN)
    tE = min(tile_e, _round_up(E, 128))
    Ep = _round_up(E, tE)

    f32 = jnp.float32
    row = edge_index[0].astype(jnp.int32)
    col = edge_index[1].astype(jnp.int32)

    # ---- wrapper-side precompute (perf review #1): rhs = [nemb[col] | relu(ea*w4)] ----
    gathered = node_embedding.astype(f32)[col]                       # (E, H) XLA gather
    edge_feat = jax.nn.relu(edge_attr.reshape(E, 1).astype(f32)
                            * w4.astype(f32))                        # (E, H) VPU
    rhsp = jnp.zeros((Ep, 2 * Hp), jnp.bfloat16)
    rhsp = rhsp.at[:E, :H].set(gathered.astype(jnp.bfloat16))
    rhsp = rhsp.at[:E, Hp:Hp + H].set(edge_feat.astype(jnp.bfloat16))

    xp = jnp.zeros((Np, Dp), f32).at[:N, :D].set(x.astype(f32))
    # Padded edges: row = -1 never matches any node -> contributes zero.
    rowp = jnp.full((1, Ep), -1, jnp.int32).at[0, :E].set(row)

    wfused = jnp.zeros((Dp + 2 * Hp, Hp), f32)
    wfused = wfused.at[:D, :H].set(w1.astype(f32))
    wfused = wfused.at[Dp:Dp + H, :H].set(w2.astype(f32))
    wfused = wfused.at[Dp + Hp:Dp + Hp + H, :H].set(w3.astype(f32))

    grid = (Np // tN, Ep // tE)

    # Footprint: ~2x(tE*2Hp bf16 + tE int32) streamed + x/out/wfused tiles + acc
    # scratch -> a few MiB; 32 MiB scoped limit leaves headroom on v5e/v6e/v7x.
    # TODO(synk): single-buffer the e-invariant inputs (x, wfused) via
    # pipeline_mode=pl.Buffered(1) and deepen rhs/row buffering on v5e once
    # BlockSpec pipeline_mode is available in the deployed jax version.
    out_padded = pl.pallas_call(
        s2v_dqn_layer_kernel,
        out_shape=jax.ShapeDtypeStruct((Np, Hp), jnp.float32),
        grid_spec=pltpu.PrefetchScalarGridSpec(
            num_scalar_prefetch=0,
            grid=grid,
            in_specs=[
                pl.BlockSpec((tN, Dp), lambda i, e: (i, 0)),            # x
                pl.BlockSpec((1, tE), lambda i, e: (0, e)),             # row
                pl.BlockSpec((tE, 2 * Hp), lambda i, e: (e, 0)),        # rhs (bf16)
                pl.BlockSpec((Dp + 2 * Hp, Hp), lambda i, e: (0, 0)),   # [w1;w2;w3]
            ],
            out_specs=pl.BlockSpec((tN, Hp), lambda i, e: (i, 0)),
            scratch_shapes=[pltpu.VMEM((tN, Dp + 2 * Hp), jnp.float32)],
        ),
        compiler_params=pltpu.CompilerParams(
            dimension_semantics=("parallel", "arbitrary"),
            vmem_limit_bytes=32 * 1024 * 1024),
    )(xp, rowp, rhsp, wfused)

    return out_padded[:N, :H]


def _reference(x, edge_index, edge_attr, node_embedding, w1, w2, w3, w4,
               rhs_dtype=jnp.float32):
    """Plain-JAX reference mirroring the PyTorch forward.

    rhs_dtype=jnp.bfloat16 rounds the gathered node embeddings / edge features the
    same way the kernel's bf16 MXU operands do (all other math stays f32).
    """
    N = x.shape[0]
    row, col = edge_index[0], edge_index[1]
    nfe = x @ w1
    gathered = node_embedding[col].astype(rhs_dtype).astype(jnp.float32)
    efe = jax.nn.relu(edge_attr @ w4).astype(rhs_dtype).astype(jnp.float32)
    ne_aggr = jnp.zeros((N, w2.shape[0]), jnp.float32).at[row].add(gathered)
    ee_aggr = jnp.zeros((N, w3.shape[0]), jnp.float32).at[row].add(efe)
    return jax.nn.relu(nfe + ne_aggr @ w2 + ee_aggr @ w3)


if __name__ == "__main__":
    # Small deterministic example sized to exercise both grid axes
    # (2 node tiles x 2 edge tiles with tile_n=8, tile_e=128).
    N, E = 16, 256
    input_dim, hidden_dim = 4, 32

    key = jax.random.PRNGKey(0)
    k1, k2, k3, k4, k5, k6, k7, k8 = jax.random.split(key, 8)

    x = jax.random.normal(k1, (N, input_dim), jnp.float32)
    node_embedding = jax.random.normal(k2, (N, hidden_dim), jnp.float32)
    edge_attr = jax.random.normal(k3, (E, 1), jnp.float32)
    edge_index = jax.random.randint(k4, (2, E), 0, N, jnp.int32)

    # nn.Linear(in, out, bias=False) weight is [out, in]; we keep [in, out]
    # so that x @ W == x @ weight.T. Deterministic Gaussian init.
    w1 = jax.random.normal(k5, (input_dim, hidden_dim), jnp.float32) * 0.1
    w2 = jax.random.normal(k6, (hidden_dim, hidden_dim), jnp.float32) * 0.1
    w3 = jax.random.normal(k7, (hidden_dim, hidden_dim), jnp.float32) * 0.1
    w4 = jax.random.normal(k8, (1, hidden_dim), jnp.float32) * 0.1

    out = s2v_dqn_layer(x, edge_index, edge_attr, node_embedding,
                        w1, w2, w3, w4, tile_e=128, tile_n=8)
    out = jax.block_until_ready(out)
    assert out.shape == (N, hidden_dim)

    # Tight check vs a reference whose only delta is the same bf16 rhs rounding.
    ref_bf16 = _reference(x, edge_index, edge_attr, node_embedding,
                          w1, w2, w3, w4, rhs_dtype=jnp.bfloat16)
    assert jnp.allclose(out, ref_bf16, atol=5e-4, rtol=5e-4), \
        "mismatch vs bf16-rhs reference"

    # Documented looser check vs the pure-f32 PyTorch-equivalent reference
    # (delta stems only from bf16 rounding of the gathered rhs operands).
    ref_f32 = _reference(x, edge_index, edge_attr, node_embedding, w1, w2, w3, w4)
    assert jnp.allclose(out, ref_f32, atol=5e-2, rtol=5e-2), \
        "mismatch vs f32 reference"

    print("KERNEL_OK")
</pallas_src>

<mosaic_0001>
module attributes {stable_mosaic.version = 11 : i64} {
  func.func @s2v_dqn_layer_kernel(%arg0: i32, %arg1: i32, %arg2: memref<8x128xf32, #tpu.memory_space<vmem>>, %arg3: memref<1x128xi32, #tpu.memory_space<vmem>>, %arg4: memref<128x256xbf16, #tpu.memory_space<vmem>>, %arg5: memref<384x128xf32, #tpu.memory_space<vmem>>, %arg6: memref<8x128xf32, #tpu.memory_space<vmem>>, %arg7: memref<8x384xf32, #tpu.memory_space<vmem>>) attributes {dimension_semantics = [#tpu.dimension_semantics<parallel>, #tpu.dimension_semantics<arbitrary>], iteration_bounds = array<i64: 2, 2>, scalar_prefetch = 0 : i64, scratch_operands = 1 : i64, tpu.core_type = #tpu.core_type<tc>, window_params = [{transform_indices = @transform_0, window_bounds = array<i64: 8, 128>}, {transform_indices = @transform_1, window_bounds = array<i64: 1, 128>}, {transform_indices = @transform_2, window_bounds = array<i64: 128, 256>}, {pipeline_mode = #tpu.pipeline_mode<synchronous>, transform_indices = @transform_3, window_bounds = array<i64: 384, 128>}, {transform_indices = @transform_4, window_bounds = array<i64: 8, 128>}]} {
    %c0_i32 = arith.constant 0 : i32
    %0 = arith.cmpi eq, %arg1, %c0_i32 : i32
    %1 = arith.extui %0 : i1 to i32
    %c0_i32_0 = arith.constant 0 : i32
    %2 = arith.cmpi ne, %1, %c0_i32_0 : i32
    scf.if %2 {
      %c0_8 = arith.constant 0 : index
      %c0_9 = arith.constant 0 : index
      %21 = vector.load %arg2[%c0_8, %c0_9] : memref<8x128xf32, #tpu.memory_space<vmem>>, vector<8x128xf32>
      %c0_10 = arith.constant 0 : index
      %c0_11 = arith.constant 0 : index
      %22 = vector.load %arg7[%c0_10, %c0_11] : memref<8x384xf32, #tpu.memory_space<vmem>>, vector<8x128xf32>
      tpu.vector_store %arg7[%c0_10, %c0_11], %21 {strides = array<i32>} : memref<8x384xf32, #tpu.memory_space<vmem>>, vector<8x128xf32>,
      %cst_12 = arith.constant 0.000000e+00 : f32
      %23 = vector.broadcast %cst_12 : f32 to vector<8x256xf32>
      %c0_13 = arith.constant 0 : index
      %c128_14 = arith.constant 128 : index
      %24 = vector.load %arg7[%c0_13, %c128_14] : memref<8x384xf32, #tpu.memory_space<vmem>>, vector<8x256xf32>
      tpu.vector_store %arg7[%c0_13, %c128_14], %23 {strides = array<i32>} : memref<8x384xf32, #tpu.memory_space<vmem>>, vector<8x256xf32>,
    } else {
    }
    %c8_i32 = arith.constant 8 : i32
    %3 = arith.muli %arg0, %c8_i32 : i32
    %4 = tpu.iota {dimensions = array<i32: 0>} : vector<8x128xi32>
    %5 = vector.broadcast %3 : i32 to vector<8x128xi32>
    %6 = arith.addi %4, %5 : vector<8x128xi32>
    %c0 = arith.constant 0 : index
    %c0_1 = arith.constant 0 : index
    %7 = vector.load %arg3[%c0, %c0_1] : memref<1x128xi32, #tpu.memory_space<vmem>>, vector<1x128xi32>
    %8 = vector.broadcast %7 : vector<1x128xi32> to vector<8x128xi32>
    %9 = arith.cmpi eq, %6, %8 : vector<8x128xi32>
    %10 = arith.extui %9 : vector<8x128xi1> to vector<8x128xi32>
    %11 = arith.sitofp %10 : vector<8x128xi32> to vector<8x128xf32>
    %12 = arith.truncf %11 : vector<8x128xf32> to vector<8x128xbf16>
    %c0_2 = arith.constant 0 : index
    %c128 = arith.constant 128 : index
    %13 = vector.load %arg7[%c0_2, %c128] : memref<8x384xf32, #tpu.memory_space<vmem>>, vector<8x256xf32>
    %c0_3 = arith.constant 0 : index
    %c0_4 = arith.constant 0 : index
    %14 = vector.load %arg4[%c0_3, %c0_4] : memref<128x256xbf16, #tpu.memory_space<vmem>>, vector<128x256xbf16>
    %cst = arith.constant dense<0.000000e+00> : vector<8x256xf32>
    %15 = tpu.matmul %12, %14, %cst {dimension_numbers = #tpu.dot_dimension_numbers<[1], [0], [0], [1], [0, 0, 1, 1], [], []>} : vector<8x128xbf16>, vector<128x256xbf16>, vector<8x256xf32> -> vector<8x256xf32>
    %16 = arith.addf %13, %15 : vector<8x256xf32>
    %c0_5 = arith.constant 0 : index
    %c128_6 = arith.constant 128 : index
    %17 = vector.load %arg7[%c0_5, %c128_6] : memref<8x384xf32, #tpu.memory_space<vmem>>, vector<8x256xf32>
    tpu.vector_store %arg7[%c0_5, %c128_6], %16 {strides = array<i32>} : memref<8x384xf32, #tpu.memory_space<vmem>>, vector<8x256xf32>,
    %c1_i32 = arith.constant 1 : i32
    %18 = arith.cmpi eq, %arg1, %c1_i32 : i32
    %19 = arith.extui %18 : i1 to i32
    %c0_i32_7 = arith.constant 0 : i32
    %20 = arith.cmpi ne, %19, %c0_i32_7 : i32
    scf.if %20 {
      %c0_8 = arith.constant 0 : index
      %c0_9 = arith.constant 0 : index
      %21 = vector.load %arg7[%c0_8, %c0_9] : memref<8x384xf32, #tpu.memory_space<vmem>>, vector<8x384xf32>
      %c0_10 = arith.constant 0 : index
      %c0_11 = arith.constant 0 : index
      %22 = vector.load %arg5[%c0_10, %c0_11] : memref<384x128xf32, #tpu.memory_space<vmem>>, vector<384x128xf32>
      %cst_12 = arith.constant dense<0.000000e+00> : vector<8x128xf32>
      %23 = tpu.matmul %21, %22, %cst_12 {dimension_numbers = #tpu.dot_dimension_numbers<[1], [0], [0], [1], [0, 0, 1, 1], [], []>} : vector<8x384xf32>, vector<384x128xf32>, vector<8x128xf32> -> vector<8x128xf32>
      %cst_13 = arith.constant 0.000000e+00 : f32
      %24 = vector.broadcast %cst_13 : f32 to vector<8x128xf32>
      %25 = arith.maximumf %23, %24 : vector<8x128xf32>
      %c0_14 = arith.constant 0 : index
      %c0_15 = arith.constant 0 : index
      %26 = vector.load %arg6[%c0_14, %c0_15] : memref<8x128xf32, #tpu.memory_space<vmem>>, vector<8x128xf32>
      tpu.vector_store %arg6[%c0_14, %c0_15], %25 {strides = array<i32>} : memref<8x128xf32, #tpu.memory_space<vmem>>, vector<8x128xf32>,
    } else {
    }
    return
  }
  func.func @transform_0(%arg0: i32, %arg1: i32) -> (i32, i32) {
    %c0_i32 = arith.constant 0 : i32
    %c0_i32_0 = arith.constant 0 : i32
    return %arg0, %c0_i32 : i32, i32
  }
  func.func @transform_1(%arg0: i32, %arg1: i32) -> (i32, i32) {
    %c0_i32 = arith.constant 0 : i32
    %c0_i32_0 = arith.constant 0 : i32
    return %c0_i32, %arg1 : i32, i32
  }
  func.func @transform_2(%arg0: i32, %arg1: i32) -> (i32, i32) {
    %c0_i32 = arith.constant 0 : i32
    %c0_i32_0 = arith.constant 0 : i32
    return %arg1, %c0_i32 : i32, i32
  }
  func.func @transform_3(%arg0: i32, %arg1: i32) -> (i32, i32) {
    %c0_i32 = arith.constant 0 : i32
    %c0_i32_0 = arith.constant 0 : i32
    %c0_i32_1 = arith.constant 0 : i32
    return %c0_i32, %c0_i32_0 : i32, i32
  }
  func.func @transform_4(%arg0: i32, %arg1: i32) -> (i32, i32) {
    %c0_i32 = arith.constant 0 : i32
    %c0_i32_0 = arith.constant 0 : i32
    return %arg0, %c0_i32 : i32, i32
  }
}

</mosaic_0001>

<llo_original>
// kernel: s2v_dqn_layer.1
$region0: #{s2v_dqn_layer.1}
  #allocation0 [shape = 'u32[]', space=smem, size = 0x4, offset = 0x4, fixed_abs, tag = 'smem constant byte address 0x4 - core index']
  #allocation1 [shape = 'u32[144,128]{1,0:T(1,128)}', space=vmem, size = 0x12000, scoped, tag = 'internal scratch']
  #allocation2 [shape = 'f32[8,384]{1,0:T(8,128)}', space=vmem, size = 0x3000, scoped, tag = 'scratch operand']
  %s0 = inlined_call_operand.vmem [shape: f32[16,128], index: 0, kind: input, shape index: {}]
  %s1 = inlined_call_operand.vmem [shape: s32[1,256], index: 1, kind: input, shape index: {}]
  %s2 = inlined_call_operand.vmem [shape: bf16[256,256], index: 2, kind: input, shape index: {}]
  %s3 = inlined_call_operand.vmem [shape: f32[384,128], index: 3, kind: input, shape index: {}]
  %s4 = inlined_call_operand.hbm [shape: f32[16,128], index: 4, kind: output, shape index: {}]
  %s5 = sld [smem:[#allocation0]]
  $region57: #{s2v_dqn_layer.1} parent=0
    _
  %s7 = ssub.s32 1, %s5
  %s8 = scalar_select 0, %s7, %s5
  $region1: #{s2v_dqn_layer.1} parent=0
    #allocation3 [shape = 'u8[8192]{0}', space=vmem, size = 0x2000, scoped, tag = 'output window, operand 0']
    #allocation4 [shape = 's32[2]{0}', space=sflag, size = 0x8, scoped, tag = 'scoped memory for s2v_dqn_layer.1']
    %9 = vsyncpa [#allocation4], 0
    %s10 = scalar_lea.sflag [#allocation4], 1
    %11 = vsyncpa %s10, 0
    loop: start=0, step=1, limit=6
    $region2: #{s2v_dqn_layer.1} parent=1 // loop_pre_header
      _
    $region3: #{s2v_dqn_layer.1} parent=1 // loop_header
      %s13 = sphi 0, %s17
      %p14 = scmp.ge.s32.totalorder %s13, 6
      %s20 = sphi 0, %s32
      %s21 = sphi 0, %s28
      %s22 = sphi 0, %s20
      %s23 = sphi 0, %s21
      %s24 = sphi 0, %s22
      %s25 = sphi 0, %s23
      %s35 = sphi 0, %s37
      %s38 = sphi 0, %s35
      %s39 = sphi 0, %s38
      %s55 = sphi 0, %s39
      %s61 = sphi 0, %s63
      %s64 = sphi 0, %s61
      %s65 = sphi 0, %s64
      %s81 = sphi 0, %s65
      %s87 = sphi 0, %s89
      %s90 = sphi 0, %s87
      %s91 = sphi 0, %s90
      %s107 = sphi 0, %s91
      %s111 = sphi 0, %s111
      %s113 = sphi 0, %s111
      %s114 = sphi 0, %s113
      %s128 = sphi 0, %s114
      %s134 = sphi 0, %s136
      %s137 = sphi 0, %s134
      %s138 = sphi 0, %s137
      %s154 = sphi 0, %s138
    $region4: #{s2v_dqn_layer.1} parent=1 // loop_header_branch
      %16 = sbr.rel (%p14) target = $region8
    $region5: #{s2v_dqn_layer.1} parent=1 // loop_body
      %s18 = ssub.s32 %s13, 1
      %s19 = ssub.s32 %s13, 2
      %s26 = sadd.s32 1, %s21
      %p27 = scmp.ge.s32.totalorder %s26, 2
      %s28 = scalar_select %p27, 0, %s26
      %s29 = sadd.s32 1, %s20
      %s30 = scalar_select %p27, %s29, %s20
      %p31 = scmp.ge.s32.totalorder %s30, 2
      %s32 = scalar_select %p31, 0, %s30
      %s33 = ssub.s32 %s20, %s32
      %p34 = scmp.eq.s32.totalorder %s33, 0
      %s36 = sadd.s32 %s35, 1
      %s37 = scalar_select %p34, %s35, %s36
      %p40 = pneg %p34
      %p41 = scmp.eq.s32.totalorder %s13, 3
      %p42 = por %p40, %p41
      %p43 = scmp.ne.s32.totalorder %s35, %s38
      %p44 = scmp.eq.s32.totalorder %s13, 0
      %p45 = por %p43, %p44
      %p46 = scmp.ne.s32.totalorder %s35, %s38
      %p47 = scmp.eq.s32.totalorder %s18, 3
      %p48 = por %p46, %p47
      %p49 = scmp.ne.s32.totalorder %s38, %s39
      %p50 = scmp.eq.s32.totalorder %s18, 0
      %p51 = por %p49, %p50
      %p52 = scmp.ne.s32.totalorder %s38, %s39
      %p53 = scmp.eq.s32.totalorder %s19, 3
      %p54 = por %p52, %p53
      %p56 = scmp.ne.s32.totalorder %s39, %s55
      %p57 = scmp.eq.s32.totalorder %s19, 0
      %p58 = por %p56, %p57
      %s59 = ssub.s32 %s21, %s28
      %p60 = scmp.eq.s32.totalorder %s59, 0
      %s62 = sadd.s32 %s61, 1
      %s63 = scalar_select %p60, %s61, %s62
      %p66 = pneg %p60
      %p67 = scmp.eq.s32.totalorder %s13, 3
      %p68 = por %p66, %p67
      %p69 = scmp.ne.s32.totalorder %s61, %s64
      %p70 = scmp.eq.s32.totalorder %s13, 0
      %p71 = por %p69, %p70
      %p72 = scmp.ne.s32.totalorder %s61, %s64
      %p73 = scmp.eq.s32.totalorder %s18, 3
      %p74 = por %p72, %p73
      %p75 = scmp.ne.s32.totalorder %s64, %s65
      %p76 = scmp.eq.s32.totalorder %s18, 0
      %p77 = por %p75, %p76
      %p78 = scmp.ne.s32.totalorder %s64, %s65
      %p79 = scmp.eq.s32.totalorder %s19, 3
      %p80 = por %p78, %p79
      %p82 = scmp.ne.s32.totalorder %s65, %s81
      %p83 = scmp.eq.s32.totalorder %s19, 0
      %p84 = por %p82, %p83
      %s85 = ssub.s32 %s21, %s28
      %p86 = scmp.eq.s32.totalorder %s85, 0
      %s88 = sadd.s32 %s87, 1
      %s89 = scalar_select %p86, %s87, %s88
      %p92 = pneg %p86
      %p93 = scmp.eq.s32.totalorder %s13, 3
      %p94 = por %p92, %p93
      %p95 = scmp.ne.s32.totalorder %s87, %s90
      %p96 = scmp.eq.s32.totalorder %s13, 0
      %p97 = por %p95, %p96
      %p98 = scmp.ne.s32.totalorder %s87, %s90
      %p99 = scmp.eq.s32.totalorder %s18, 3
      %p100 = por %p98, %p99
      %p101 = scmp.ne.s32.totalorder %s90, %s91
      %p102 = scmp.eq.s32.totalorder %s18, 0
      %p103 = por %p101, %p102
      %p104 = scmp.ne.s32.totalorder %s90, %s91
      %p105 = scmp.eq.s32.totalorder %s19, 3
      %p106 = por %p104, %p105
      %p108 = scmp.ne.s32.totalorder %s91, %s107
      %p109 = scmp.eq.s32.totalorder %s19, 0
      %p110 = por %p108, %p109
      %s112 = sadd.s32 %s111, 1
      %p115 = scmp.eq.s32.totalorder %s13, 3
      %p116 = scmp.ne.s32.totalorder %s111, %s113
      %p117 = scmp.eq.s32.totalorder %s13, 0
      %p118 = por %p116, %p117
      %p119 = scmp.ne.s32.totalorder %s111, %s113
      %p120 = scmp.eq.s32.totalorder %s18, 3
      %p121 = por %p119, %p120
      %p122 = scmp.ne.s32.totalorder %s113, %s114
      %p123 = scmp.eq.s32.totalorder %s18, 0
      %p124 = por %p122, %p123
      %p125 = scmp.ne.s32.totalorder %s113, %s114
      %p126 = scmp.eq.s32.totalorder %s19, 3
      %p127 = por %p125, %p126
      %p129 = scmp.ne.s32.totalorder %s114, %s128
      %p130 = scmp.eq.s32.totalorder %s19, 0
      %p131 = por %p129, %p130
      %s132 = ssub.s32 %s20, %s32
      %p133 = scmp.eq.s32.totalorder %s132, 0
      %s135 = sadd.s32 %s134, 1
      %s136 = scalar_select %p133, %s134, %s135
      %p139 = pneg %p133
      %p140 = scmp.eq.s32.totalorder %s13, 3
      %p141 = por %p139, %p140
      %p142 = scmp.ne.s32.totalorder %s134, %s137
      %p143 = scmp.eq.s32.totalorder %s13, 0
      %p144 = por %p142, %p143
      %p145 = scmp.ne.s32.totalorder %s134, %s137
      %p146 = scmp.eq.s32.totalorder %s18, 3
      %p147 = por %p145, %p146
      %p148 = scmp.ne.s32.totalorder %s137, %s138
      %p149 = scmp.eq.s32.totalorder %s18, 0
      %p150 = por %p148, %p149
      %p151 = scmp.ne.s32.totalorder %s137, %s138
      %p152 = scmp.eq.s32.totalorder %s19, 3
      %p153 = por %p151, %p152
      %p155 = scmp.ne.s32.totalorder %s138, %s154
      %p156 = scmp.eq.s32.totalorder %s19, 0
      %p157 = por %p155, %p156
      %p158 = scmp.le.s32.totalorder 1, %s13
      %p159 = scmp.lt.s32.totalorder %s13, 5
      %p160 = pnand %p158, %p159
      %p161 = pneg %p160
      // Predicated region
      $region9: #{s2v_dqn_layer.1} parent=5 // pred_check
        _
      $region10: #{s2v_dqn_layer.1} parent=5 // pred_check_branch
        %163 = sbr.rel (%p160) target = $region12
      $region11: #{s2v_dqn_layer.1} parent=5 // pred_region
        %s164 = ssub.s32 %s13, 1
        // Predicated region
        $region13: #{s2v_dqn_layer.1} parent=11 // pred_check
          %p165 = pneg %p124
        $region14: #{s2v_dqn_layer.1} parent=11 // pred_check_branch
          %167 = sbr.rel (%p165) target = $region16
        $region15: #{s2v_dqn_layer.1} parent=11 // pred_region
          _
        $region16: #{s2v_dqn_layer.1} parent=11 // pred_fallthru
          _
      $region12: #{s2v_dqn_layer.1} parent=5 // pred_fallthru
        _
      %p168 = scmp.lt.s32.totalorder %s13, 4
      // Predicated region
      $region17: #{s2v_dqn_layer.1} parent=5 // pred_check
        %p169 = pneg %p168
      $region18: #{s2v_dqn_layer.1} parent=5 // pred_check_branch
        %171 = sbr.rel (%p169) target = $region20
      $region19: #{s2v_dqn_layer.1} parent=5 // pred_region
        // Predicated region
        $region21: #{s2v_dqn_layer.1} parent=19 // pred_check
          %p172 = pneg %p45
        $region22: #{s2v_dqn_layer.1} parent=19 // pred_check_branch
          %174 = sbr.rel (%p172) target = $region24
        $region23: #{s2v_dqn_layer.1} parent=19 // pred_region
          %p175 = scmp.lt.s32.totalorder %s20, 1
          %s176 = scalar_select %p175, %s20, 1
          %s177 = smul.addr %s176, 8
          %s178 = scalar_lea.vmem %s0, %s177
        $region24: #{s2v_dqn_layer.1} parent=19 // pred_fallthru
          _
        // Predicated region
        $region25: #{s2v_dqn_layer.1} parent=19 // pred_check
          %p179 = pneg %p71
        $region26: #{s2v_dqn_layer.1} parent=19 // pred_check_branch
          %181 = sbr.rel (%p179) target = $region28
        $region27: #{s2v_dqn_layer.1} parent=19 // pred_region
          %p182 = scmp.lt.s32.totalorder %s21, 1
          %s183 = scalar_select %p182, %s21, 1
          %s184 = scalar_lea.vmem %s1, %s183
        $region28: #{s2v_dqn_layer.1} parent=19 // pred_fallthru
          _
        // Predicated region
        $region29: #{s2v_dqn_layer.1} parent=19 // pred_check
          %p185 = pneg %p97
        $region30: #{s2v_dqn_layer.1} parent=19 // pred_check_branch
          %187 = sbr.rel (%p185) target = $region32
        $region31: #{s2v_dqn_layer.1} parent=19 // pred_region
          %s188 = smul.u32 16, %s21
          %p189 = scmp.lt.s32.totalorder %s188, 31
          %s190 = scalar_select %p189, %s188, 31
          %s191 = smul.addr %s190, 2
          %s192 = smul.addr %s191, 4
          %s193 = scalar_lea.vmem %s2, %s192
          %s194 = smul.u32 16, %s21
        $region32: #{s2v_dqn_layer.1} parent=19 // pred_fallthru
          _
      $region20: #{s2v_dqn_layer.1} parent=5 // pred_fallthru
        _
      %p195 = scmp.le.s32.totalorder 1, %s13
      %p196 = scmp.lt.s32.totalorder %s13, 5
      %p197 = pnand %p195, %p196
      %p198 = pneg %p197
      // Predicated region
      $region33: #{s2v_dqn_layer.1} parent=5 // pred_check
        _
      $region34: #{s2v_dqn_layer.1} parent=5 // pred_check_branch
        %200 = sbr.rel (%p197) target = $region36
      $region35: #{s2v_dqn_layer.1} parent=5 // pred_region
        %s201 = ssub.s32 %s13, 1
        %p202 = scmp.lt.s32.totalorder %s22, 1
        %s203 = scalar_select %p202, %s22, 1
        %s204 = smul.addr %s203, 8
        %s205 = scalar_lea.vmem %s0, %s204
        %p206 = pneg %p51
        %p207 = pneg %p48
        %p208 = scmp.lt.s32.totalorder %s23, 1
        %s209 = scalar_select %p208, %s23, 1
        %s210 = scalar_lea.vmem %s1, %s209
        %p211 = pneg %p77
        %p212 = pneg %p74
        %s213 = smul.u32 16, %s23
        %p214 = scmp.lt.s32.totalorder %s213, 31
        %s215 = scalar_select %p214, %s213, 31
        %s216 = smul.addr %s215, 2
        %s217 = smul.addr %s216, 4
        %s218 = scalar_lea.vmem %s2, %s217
        %p219 = pneg %p103
        %p220 = pneg %p100
        %p221 = pneg %p124
        %p222 = pneg %p121
        %p223 = pneg %p150
        %p224 = pneg %p147
        %s225 = sand.u32 %s137, 1
        %s226 = scalar_lea.sflag [#allocation4], %s225
        %s227 = sand.u32 %s137, 1
        %s228 = smul.addr %s227, 8
        %s229 = scalar_lea.vmem [#allocation3], %s228
        %p230 = scmp.lt.s32.totalorder %s22, 1
        %s231 = scalar_select %p230, %s22, 1
        %s232 = smul.addr %s231, 8
        %s233 = scalar_lea.vmem %s0, %s232
        %p234 = scmp.lt.s32.totalorder %s23, 1
        %s235 = scalar_select %p234, %s23, 1
        %s236 = scalar_lea.vmem %s1, %s235
        %s237 = smul.u32 16, %s23
        %p238 = scmp.lt.s32.totalorder %s237, 31
        %s239 = scalar_select %p238, %s237, 31
        %s240 = smul.addr %s239, 2
        %s241 = smul.addr %s240, 4
        %s242 = scalar_lea.vmem %s2, %s241
        %s243 = smul.u32 16, %s23
        %p245 = scmp.eq.s32.totalorder %s23, 0
        // Predicated region
        $region37: #{s2v_dqn_layer.1} parent=35 // pred_check
          %p246 = pneg %p245
        $region38: #{s2v_dqn_layer.1} parent=35 // pred_check_branch
          %248 = sbr.rel (%p246) target = $region40
        $region39: #{s2v_dqn_layer.1} parent=35 // pred_region
          %v249 = vld [vmem:[%s233] sm:$0xff]
          %250 = vst [vmem:[#allocation2] sm:$0xff] %v249
          %251 = vst [vmem:[#allocation2 + $0x8] sm:$0xff] 0.0
          %252 = vst [vmem:[#allocation2 + $0x10] sm:$0xff] 0.0
        $region40: #{s2v_dqn_layer.1} parent=35 // pred_fallthru
          _
        %s253 = smul.u32 %s22, 8
        %v254 = vlaneseq
        %v255 = vshrl.u32 %v254, 7
        %v256 = vstv %s253
        %v257 = vadd.s32 %v255, %v256
        %v258 = vld [vmem:[%s236] sm:$0x1]
        %v259 = vlaneseq
        %v260 = vshrl.u32 %v259, 7
        %v261 = vsub.s32 0, %v260
        %v262 = vrot.slane %v258, %v261
        %vm263 = vcmp.eq.s32.totalorder %v257, %v262
        %v264 = vsel %vm263, 1, 0
        %v265 = vcvt.s32.f32 %v264
        %v266 = vpack.c.bf16 %v265, %v265
        %v267 = vld [vmem:[#allocation2 + $0x8] sm:$0xff]
        %v268 = vld [vmem:[#allocation2 + $0x10] sm:$0xff]
        %v269 = vld [vmem:[%s242] sm:$0xff]
        %v270 = vld [vmem:[%s242 + $0x8] sm:$0xff]
        %v271 = vld [vmem:[%s242 + $0x10] sm:$0xff]
        %v272 = vld [vmem:[%s242 + $0x18] sm:$0xff]
        %v273 = vld [vmem:[%s242 + $0x20] sm:$0xff]
        %v274 = vld [vmem:[%s242 + $0x28] sm:$0xff]
        %v275 = vld [vmem:[%s242 + $0x30] sm:$0xff]
        %v276 = vld [vmem:[%s242 + $0x38] sm:$0xff]
        %v277 = vld [vmem:[%s242 + $0x40] sm:$0xff]
        %v278 = vld [vmem:[%s242 + $0x48] sm:$0xff]
        %v279 = vld [vmem:[%s242 + $0x50] sm:$0xff]
        %v280 = vld [vmem:[%s242 + $0x58] sm:$0xff]
        %v281 = vld [vmem:[%s242 + $0x60] sm:$0xff]
        %v282 = vld [vmem:[%s242 + $0x68] sm:$0xff]
        %v283 = vld [vmem:[%s242 + $0x70] sm:$0xff]
        %v284 = vld [vmem:[%s242 + $0x78] sm:$0xff]
        %v301 = vunpack.c.l.b16 %v269
        %v302 = vunpack.c.h.b16 %v269
        %v303 = vunpack.c.l.b16 %v270
        %v304 = vunpack.c.h.b16 %v270
        %v305 = vunpack.c.l.b16 %v271
        %v306 = vunpack.c.h.b16 %v271
        %v307 = vunpack.c.l.b16 %v272
        %v308 = vunpack.c.h.b16 %v272
        %v309 = vunpack.c.l.b16 %v273
        %v310 = vunpack.c.h.b16 %v273
        %v311 = vunpack.c.l.b16 %v274
        %v312 = vunpack.c.h.b16 %v274
        %v313 = vunpack.c.l.b16 %v275
        %v314 = vunpack.c.h.b16 %v275
        %v315 = vunpack.c.l.b16 %v276
        %v316 = vunpack.c.h.b16 %v276
        %v317 = vunpack.c.l.b16 %v277
        %v318 = vunpack.c.h.b16 %v277
        %v319 = vunpack.c.l.b16 %v278
        %v320 = vunpack.c.h.b16 %v278
        %v321 = vunpack.c.l.b16 %v279
        %v322 = vunpack.c.h.b16 %v279
        %v323 = vunpack.c.l.b16 %v280
        %v324 = vunpack.c.h.b16 %v280
        %v325 = vunpack.c.l.b16 %v281
        %v326 = vunpack.c.h.b16 %v281
        %v327 = vunpack.c.l.b16 %v282
        %v328 = vunpack.c.h.b16 %v282
        %v329 = vunpack.c.l.b16 %v283
        %v330 = vunpack.c.h.b16 %v283
        %v331 = vunpack.c.l.b16 %v284
        %v332 = vunpack.c.h.b16 %v284
        %v333 = vpack.c.b16 %v303, %v301
        %v334 = vpack.c.b16 %v304, %v302
        %v335 = vpack.c.b16 %v307, %v305
        %v336 = vpack.c.b16 %v308, %v306
        %v337 = vpack.c.b16 %v311, %v309
        %v338 = vpack.c.b16 %v312, %v310
        %v339 = vpack.c.b16 %v315, %v313
        %v340 = vpack.c.b16 %v316, %v314
        %v341 = vpack.c.b16 %v319, %v317
        %v342 = vpack.c.b16 %v320, %v318
        %v343 = vpack.c.b16 %v323, %v321
        %v344 = vpack.c.b16 %v324, %v322
        %v345 = vpack.c.b16 %v327, %v325
        %v346 = vpack.c.b16 %v328, %v326
        %v347 = vpack.c.b16 %v331, %v329
        %v348 = vpack.c.b16 %v332, %v330
        %365 = vmatprep.subr.bf16.mxu0 %v348
        %366 = vmatpush1.bf16.msra.mxu0 %v347
        %367 = vmatprep.subr.bf16.mxu0 %v346
        %368 = vmatpush1.bf16.msra.mxu0 %v345
        %369 = vmatprep.subr.bf16.mxu0 %v344
        %370 = vmatpush1.bf16.msra.mxu0 %v343
        %371 = vmatprep.subr.bf16.mxu0 %v342
        %372 = vmatpush1.bf16.msra.mxu0 %v341
        %373 = vmatprep.subr.bf16.mxu0 %v340
        %374 = vmatpush1.bf16.msra.mxu0 %v339
        %375 = vmatprep.subr.bf16.mxu0 %v338
        %376 = vmatpush1.bf16.msra.mxu0 %v337
        %377 = vmatprep.subr.bf16.mxu0 %v336
        %378 = vmatpush1.bf16.msra.mxu0 %v335
        %379 = vmatprep.subr.bf16.mxu0 %v334
        %380 = vmatpush1.bf16.msra.mxu0 %v333
        %381 = vmatprep.subr.bf16.mxu0 0
        %382 = vmatpush2.bf16.msra.mxu0 0
        %383 = vmatprep.subr.bf16.mxu0 0
        %384 = vmatpush2.bf16.msra.mxu0 0
        %385 = vmatprep.subr.bf16.mxu0 0
        %386 = vmatpush2.bf16.msra.mxu0 0
        %387 = vmatprep.subr.bf16.mxu0 0
        %388 = vmatpush2.bf16.msra.mxu0 0
        %389 = vmatprep.subr.bf16.mxu0 0
        %390 = vmatpush2.bf16.msra.mxu0 0
        %391 = vmatprep.subr.bf16.mxu0 0
        %392 = vmatpush2.bf16.msra.mxu0 0
        %393 = vmatprep.subr.bf16.mxu0 0
        %394 = vmatpush2.bf16.msra.mxu0 0
        %395 = vmatprep.subr.bf16.mxu0 0
        %396 = vmatpush2.bf16.msra.mxu0 0
        %397 = vmatprep.mubr.bf16.mxu0 0
        %398 = vmatmul.mubr.bf16.gmra.mxu0 %v266
        %v399 = vpop.f32.mrf.mxu0
        %v400 = vadd.f32 0.0, %v399
        %v401 = vpop.f32.mrf.mxu0
        %v402 = vadd.f32 0.0, %v401
        %v403 = vpop.f32.mrf.mxu0
        %v404 = vpop.f32.mrf.mxu0
        %405 = vdwg.mxu0
        %v406 = vadd.f32 %v267, %v400
        %v407 = vadd.f32 %v268, %v402
        %408 = vst [vmem:[#allocation2 + $0x8] sm:$0xff] %v406
        %409 = vst [vmem:[#allocation2 + $0x10] sm:$0xff] %v407
        %p410 = scmp.eq.s32.totalorder %s23, 1
        // Predicated region
        $region41: #{s2v_dqn_layer.1} parent=35 // pred_check
          %p411 = pneg %p410
        $region42: #{s2v_dqn_layer.1} parent=35 // pred_check_branch
          %413 = sbr.rel (%p411) target = $region44
        $region43: #{s2v_dqn_layer.1} parent=35 // pred_region
          %v414 = vld [vmem:[#allocation2] sm:$0xff]
          %v415 = vld [vmem:[#allocation2 + $0x8] sm:$0xff]
          %v416 = vld [vmem:[#allocation2 + $0x10] sm:$0xff]
          %v417 = vld [vmem:[%s3] sm:$0xff]
          %v418 = vld [vmem:[%s3 + $0x8] sm:$0xff]
          %v419 = vld [vmem:[%s3 + $0x10] sm:$0xff]
          %v420 = vld [vmem:[%s3 + $0x18] sm:$0xff]
          %v421 = vld [vmem:[%s3 + $0x20] sm:$0xff]
          %v422 = vld [vmem:[%s3 + $0x28] sm:$0xff]
          %v423 = vld [vmem:[%s3 + $0x30] sm:$0xff]
          %v424 = vld [vmem:[%s3 + $0x38] sm:$0xff]
          %v425 = vld [vmem:[%s3 + $0x40] sm:$0xff]
          %v426 = vld [vmem:[%s3 + $0x48] sm:$0xff]
          %v427 = vld [vmem:[%s3 + $0x50] sm:$0xff]
          %v428 = vld [vmem:[%s3 + $0x58] sm:$0xff]
          %v429 = vld [vmem:[%s3 + $0x60] sm:$0xff]
          %v430 = vld [vmem:[%s3 + $0x68] sm:$0xff]
          %v431 = vld [vmem:[%s3 + $0x70] sm:$0xff]
          %v432 = vld [vmem:[%s3 + $0x78] sm:$0xff]
          %v433 = vld [vmem:[%s3 + $0x80] sm:$0xff]
          %v434 = vld [vmem:[%s3 + $0x88] sm:$0xff]
          %v435 = vld [vmem:[%s3 + $0x90] sm:$0xff]
          %v436 = vld [vmem:[%s3 + $0x98] sm:$0xff]
          %v437 = vld [vmem:[%s3 + $0xa0] sm:$0xff]
          %v438 = vld [vmem:[%s3 + $0xa8] sm:$0xff]
          %v439 = vld [vmem:[%s3 + $0xb0] sm:$0xff]
          %v440 = vld [vmem:[%s3 + $0xb8] sm:$0xff]
          %v441 = vld [vmem:[%s3 + $0xc0] sm:$0xff]
          %v442 = vld [vmem:[%s3 + $0xc8] sm:$0xff]
          %v443 = vld [vmem:[%s3 + $0xd0] sm:$0xff]
          %v444 = vld [vmem:[%s3 + $0xd8] sm:$0xff]
          %v445 = vld [vmem:[%s3 + $0xe0] sm:$0xff]
          %v446 = vld [vmem:[%s3 + $0xe8] sm:$0xff]
          %v447 = vld [vmem:[%s3 + $0xf0] sm:$0xff]
          %v448 = vld [vmem:[%s3 + $0xf8] sm:$0xff]
          %v449 = vld [vmem:[%s3 + $0x100] sm:$0xff]
          %v450 = vld [vmem:[%s3 + $0x108] sm:$0xff]
          %v451 = vld [vmem:[%s3 + $0x110] sm:$0xff]
          %v452 = vld [vmem:[%s3 + $0x118] sm:$0xff]
          %v453 = vld [vmem:[%s3 + $0x120] sm:$0xff]
          %v454 = vld [vmem:[%s3 + $0x128] sm:$0xff]
          %v455 = vld [vmem:[%s3 + $0x130] sm:$0xff]
          %v456 = vld [vmem:[%s3 + $0x138] sm:$0xff]
          %v457 = vld [vmem:[%s3 + $0x140] sm:$0xff]
          %v458 = vld [vmem:[%s3 + $0x148] sm:$0xff]
          %v459 = vld [vmem:[%s3 + $0x150] sm:$0xff]
          %v460 = vld [vmem:[%s3 + $0x158] sm:$0xff]
          %v461 = vld [vmem:[%s3 + $0x160] sm:$0xff]
          %v462 = vld [vmem:[%s3 + $0x168] sm:$0xff]
          %v463 = vld [vmem:[%s3 + $0x170] sm:$0xff]
          %v464 = vld [vmem:[%s3 + $0x178] sm:$0xff]
          %465 = vmatprep.subr.mxu0 0.0
          %466 = vmatpush1.msra.mxu0 %v432
          %467 = vmatprep.subr.mxu0 0.0
          %468 = vmatpush1.msra.mxu0 %v431
          %469 = vmatprep.subr.mxu0 0.0
          %470 = vmatpush1.msra.mxu0 %v430
          %471 = vmatprep.subr.mxu0 0.0
          %472 = vmatpush1.msra.mxu0 %v429
          %473 = vmatprep.subr.mxu0 0.0
          %474 = vmatpush1.msra.mxu0 %v428
          %475 = vmatprep.subr.mxu0 0.0
          %476 = vmatpush1.msra.mxu0 %v427
          %477 = vmatprep.subr.mxu0 0.0
          %478 = vmatpush1.msra.mxu0 %v426
          %479 = vmatprep.subr.mxu0 0.0
          %480 = vmatpush1.msra.mxu0 %v425
          %481 = vmatprep.subr.mxu0 0.0
          %482 = vmatpush1.msra.mxu0 %v424
          %483 = vmatprep.subr.mxu0 0.0
          %484 = vmatpush1.msra.mxu0 %v423
          %485 = vmatprep.subr.mxu0 0.0
          %486 = vmatpush1.msra.mxu0 %v422
          %487 = vmatprep.subr.mxu0 0.0
          %488 = vmatpush1.msra.mxu0 %v421
          %489 = vmatprep.subr.mxu0 0.0
          %490 = vmatpush1.msra.mxu0 %v420
          %491 = vmatprep.subr.mxu0 0.0
          %492 = vmatpush1.msra.mxu0 %v419
          %493 = vmatprep.subr.mxu0 0.0
          %494 = vmatpush1.msra.mxu0 %v418
          %495 = vmatprep.subr.mxu0 0.0
          %496 = vmatpush1.msra.mxu0 %v417
          %497 = vmatprep.subr.mxu0 0.0
          %498 = vmatpush2.msra.mxu0 %v448
          %499 = vmatprep.subr.mxu0 0.0
          %500 = vmatpush2.msra.mxu0 %v447
          %501 = vmatprep.subr.mxu0 0.0
          %502 = vmatpush2.msra.mxu0 %v446
          %503 = vmatprep.subr.mxu0 0.0
          %504 = vmatpush2.msra.mxu0 %v445
          %505 = vmatprep.subr.mxu0 0.0
          %506 = vmatpush2.msra.mxu0 %v444
          %507 = vmatprep.subr.mxu0 0.0
          %508 = vmatpush2.msra.mxu0 %v443
          %509 = vmatprep.subr.mxu0 0.0
          %510 = vmatpush2.msra.mxu0 %v442
          %511 = vmatprep.subr.mxu0 0.0
          %512 = vmatpush2.msra.mxu0 %v441
          %513 = vmatprep.subr.mxu0 0.0
          %514 = vmatpush2.msra.mxu0 %v440
          %515 = vmatprep.subr.mxu0 0.0
          %516 = vmatpush2.msra.mxu0 %v439
          %517 = vmatprep.subr.mxu0 0.0
          %518 = vmatpush2.msra.mxu0 %v438
          %519 = vmatprep.subr.mxu0 0.0
          %520 = vmatpush2.msra.mxu0 %v437
          %521 = vmatprep.subr.mxu0 0.0
          %522 = vmatpush2.msra.mxu0 %v436
          %523 = vmatprep.subr.mxu0 0.0
          %524 = vmatpush2.msra.mxu0 %v435
          %525 = vmatprep.subr.mxu0 0.0
          %526 = vmatpush2.msra.mxu0 %v434
          %527 = vmatprep.subr.mxu0 0.0
          %528 = vmatpush2.msra.mxu0 %v433
          %529 = vmatprep.mubr.f32.mxu0 %v415
          %530 = vmatmul.mubr.f32.gmra.mxu0 %v414
          %v531 = vpop.f32.mrf.mxu0
          %v532 = vadd.f32 0.0, %v531
          %v533 = vpop.f32.mrf.mxu0
          %534 = vdwg.mxu0
          %535 = vmatprep.subr.mxu0 0.0
          %536 = vmatpush1.msra.mxu0 %v464
          %537 = vmatprep.subr.mxu0 0.0
          %538 = vmatpush1.msra.mxu0 %v463
          %539 = vmatprep.subr.mxu0 0.0
          %540 = vmatpush1.msra.mxu0 %v462
          %541 = vmatprep.subr.mxu0 0.0
          %542 = vmatpush1.msra.mxu0 %v461
          %543 = vmatprep.subr.mxu0 0.0
          %544 = vmatpush1.msra.mxu0 %v460
          %545 = vmatprep.subr.mxu0 0.0
          %546 = vmatpush1.msra.mxu0 %v459
          %547 = vmatprep.subr.mxu0 0.0
          %548 = vmatpush1.msra.mxu0 %v458
          %549 = vmatprep.subr.mxu0 0.0
          %550 = vmatpush1.msra.mxu0 %v457
          %551 = vmatprep.subr.mxu0 0.0
          %552 = vmatpush1.msra.mxu0 %v456
          %553 = vmatprep.subr.mxu0 0.0
          %554 = vmatpush1.msra.mxu0 %v455
          %555 = vmatprep.subr.mxu0 0.0
          %556 = vmatpush1.msra.mxu0 %v454
          %557 = vmatprep.subr.mxu0 0.0
          %558 = vmatpush1.msra.mxu0 %v453
          %559 = vmatprep.subr.mxu0 0.0
          %560 = vmatpush1.msra.mxu0 %v452
          %561 = vmatprep.subr.mxu0 0.0
          %562 = vmatpush1.msra.mxu0 %v451
          %563 = vmatprep.subr.mxu0 0.0
          %564 = vmatpush1.msra.mxu0 %v450
          %565 = vmatprep.subr.mxu0 0.0
          %566 = vmatpush1.msra.mxu0 %v449
          %567 = vmatprep.subr.mxu0 0.0
          %568 = vmatpush2.msra.mxu0 0.0
          %569 = vmatprep.subr.mxu0 0.0
          %570 = vmatpush2.msra.mxu0 0.0
          %571 = vmatprep.subr.mxu0 0.0
          %572 = vmatpush2.msra.mxu0 0.0
          %573 = vmatprep.subr.mxu0 0.0
          %574 = vmatpush2.msra.mxu0 0.0
          %575 = vmatprep.subr.mxu0 0.0
          %576 = vmatpush2.msra.mxu0 0.0
          %577 = vmatprep.subr.mxu0 0.0
          %578 = vmatpush2.msra.mxu0 0.0
          %579 = vmatprep.subr.mxu0 0.0
          %580 = vmatpush2.msra.mxu0 0.0
          %581 = vmatprep.subr.mxu0 0.0
          %582 = vmatpush2.msra.mxu0 0.0
          %583 = vmatprep.subr.mxu0 0.0
          %584 = vmatpush2.msra.mxu0 0.0
          %585 = vmatprep.subr.mxu0 0.0
          %586 = vmatpush2.msra.mxu0 0.0
          %587 = vmatprep.subr.mxu0 0.0
          %588 = vmatpush2.msra.mxu0 0.0
          %589 = vmatprep.subr.mxu0 0.0
          %590 = vmatpush2.msra.mxu0 0.0
          %591 = vmatprep.subr.mxu0 0.0
          %592 = vmatpush2.msra.mxu0 0.0
          %593 = vmatprep.subr.mxu0 0.0
          %594 = vmatpush2.msra.mxu0 0.0
          %595 = vmatprep.subr.mxu0 0.0
          %596 = vmatpush2.msra.mxu0 0.0
          %597 = vmatprep.subr.mxu0 0.0
          %598 = vmatpush2.msra.mxu0 0.0
          %599 = vmatprep.mubr.f32.mxu0 0.0
          %600 = vmatmul.mubr.f32.gmra.mxu0 %v416
          %v601 = vpop.f32.mrf.mxu0
          %v602 = vadd.f32 %v532, %v601
          %v603 = vpop.f32.mrf.mxu0
          %604 = vdwg.mxu0
          %v605 = vmax.f32 %v602, 0.0
          %606 = vst [vmem:[%s229] sm:$0xff] %v605
        $region44: #{s2v_dqn_layer.1} parent=35 // pred_fallthru
          _
        %s607 = sand.u32 %s137, 1
        %s608 = scalar_lea.sflag [#allocation4], %s607
        %s609 = sand.u32 %s137, 1
        %s610 = smul.addr %s609, 8
        %s611 = scalar_lea.vmem [#allocation3], %s610
        // Predicated region
        $region45: #{s2v_dqn_layer.1} parent=35 // pred_check
          %p612 = pneg %p147
        $region46: #{s2v_dqn_layer.1} parent=35 // pred_check_branch
          %614 = sbr.rel (%p612) target = $region48
        $region47: #{s2v_dqn_layer.1} parent=35 // pred_region
          %s616 = ssub.s32 128, 128
          %617 = vsyncadd %s608, %s616
          %s618 = smul.addr %s22, 128
          %s619 = scalar_lea.hbm %s4, %s618
          %s621 = sshll.u32 %s611, 4
          %s622 = int_to_ptr.vmem [resolvable:$true] %s621
          %624 = dma.vmem_to_hbm [thread:$0]  %s622, 128, %s619, %s608
        $region48: #{s2v_dqn_layer.1} parent=35 // pred_fallthru
          _
      $region36: #{s2v_dqn_layer.1} parent=5 // pred_fallthru
        _
      %p625 = scmp.le.s32.totalorder 2, %s13
      // Predicated region
      $region49: #{s2v_dqn_layer.1} parent=5 // pred_check
        %p626 = pneg %p625
      $region50: #{s2v_dqn_layer.1} parent=5 // pred_check_branch
        %628 = sbr.rel (%p626) target = $region52
      $region51: #{s2v_dqn_layer.1} parent=5 // pred_region
        %s629 = ssub.s32 %s13, 2
        // Predicated region
        $region53: #{s2v_dqn_layer.1} parent=51 // pred_check
          %p630 = pneg %p153
        $region54: #{s2v_dqn_layer.1} parent=51 // pred_check_branch
          %632 = sbr.rel (%p630) target = $region56
        $region55: #{s2v_dqn_layer.1} parent=51 // pred_region
          %s633 = sand.u32 %s138, 1
          %s634 = scalar_lea.sflag [#allocation4], %s633
          %s635 = sand.u32 %s138, 1
          %s636 = smul.addr %s635, 8
          %s637 = scalar_lea.vmem [#allocation3], %s636
          %638 = dma.done %s634, 128
        $region56: #{s2v_dqn_layer.1} parent=51 // pred_fallthru
          _
      $region52: #{s2v_dqn_layer.1} parent=5 // pred_fallthru
        _
    $region6: #{s2v_dqn_layer.1} parent=1 // loop_footer
      %s17 = sadd.s32 1, %s13
    $region7: #{s2v_dqn_layer.1} parent=1 // loop_footer_branch
      %12 = sbr.rel target = $region3
    $region8: #{s2v_dqn_layer.1} parent=1 // loop_exit
      _
    %639 = vsyncpa [#allocation4], 1
    %s640 = scalar_lea.sflag [#allocation4], 1
    %641 = vsyncpa %s640, 1

</llo_original>
